<compile_context>
chip_gen: v6e
topology: v6e:2x2x1
jax: 0.10.0
libtpu: 0.0.40
codegen_flags: <defaults>
</compile_context>

<pallas_src>
import jax
import jax.numpy as jnp
import numpy as np
from jax.experimental import pallas as pl
from jax.experimental.pallas import tpu as pltpu

# ---------------- configuration (small, consistent with the module) ----------
B = 8                      # batch
N_FEAT = 4                 # number of sparse features
VOCAB = 10                 # vocab size per feature
EMB_DIM = 8                # embed_dim per feature
D = N_FEAT * EMB_DIM       # input_dims = 32
N_EXPERT = 4
EXPERT_DIMS = [64, 32]     # expert_params["dims"]
H1, H2 = EXPERT_DIMS
TOWER_DIMS = [16]          # tower_params_list[i]["dims"]
T1 = TOWER_DIMS[0]
TASK_TYPES = ["classification", "regression"]
N_TASK = len(TASK_TYPES)

CLIP_MIN = 1e-15
CLIP_MAX = 1.0 - 1e-15
BN_EPS = 1e-5

BATCH_TILE = 1024          # rows of embed_x per grid step

# fused x-projection width: per-expert cross block (E*D) + both gate logits (T*E)
P_W = N_EXPERT * D + N_TASK * N_EXPERT

# consolidated bias buffer layout (each segment starts on a 128-lane boundary)
def _pad128(n):
    return -(-n // 128) * 128

BP_LEN, B1_LEN, B2_LEN, TB1_LEN, TBO_LEN = (
    P_W, N_EXPERT * H1, N_EXPERT * H2, N_TASK * T1, N_TASK)
BP_OFF = 0
B1_OFF = BP_OFF + _pad128(BP_LEN)
B2_OFF = B1_OFF + _pad128(B1_LEN)
TB1_OFF = B2_OFF + _pad128(B2_LEN)
TBO_OFF = TB1_OFF + _pad128(TB1_LEN)
BIAS_LEN = TBO_OFF + _pad128(TBO_LEN)


# ---------------------------- Pallas kernel ----------------------------------
def mmoe_kernel(x_ref,                       # (BB, D) f32
                wp_ref,                      # (D, E*D + T*E)      bf16
                w1_ref, w2_ref,              # (E*D, E*H1), (E*H1, E*H2)  bf16
                gsum_ref, sel_ref,           # (T*E, T*E), (T*E, T*E*H2)  bf16 (0/1)
                tw1_ref, two_ref,            # (T*E*H2, T*T1), (T*T1, T)  bf16
                bias_ref,                    # (1, BIAS_LEN)        f32
                out_ref):                    # (BB, T)              f32
    x = x_ref[...]                                                    # (BB, D) f32
    xb = x.astype(jnp.bfloat16)

    bp = bias_ref[:, BP_OFF:BP_OFF + BP_LEN]
    b1 = bias_ref[:, B1_OFF:B1_OFF + B1_LEN]
    b2 = bias_ref[:, B2_OFF:B2_OFF + B2_LEN]
    tb1 = bias_ref[:, TB1_OFF:TB1_OFF + TB1_LEN]
    tbo = bias_ref[:, TBO_OFF:TBO_OFF + TBO_LEN]

    # One fused projection: columns [0, E*D) hold each expert's cross scalar
    # x.w_e expanded to D lanes (+1.0 bias); columns [E*D, E*D+T*E) hold both
    # tasks' gate logits (BN already folded in).
    xp = jnp.dot(xb, wp_ref[...], preferred_element_type=jnp.float32) + bp

    # Cross layer, lane-packed over experts: xc = [x|x|x|x] * (x.w_e + 1)
    # (the cross bias is folded into b1 host-side).
    xc = jnp.concatenate([x] * N_EXPERT, axis=1) * xp[:, :N_EXPERT * D]  # (BB, E*D)

    # Expert MLP: two block-diagonal matmuls (per-channel BN folded).
    h1 = jnp.dot(xc.astype(jnp.bfloat16), w1_ref[...],
                 preferred_element_type=jnp.float32) + b1
    h1 = jnp.maximum(h1, 0.0)                                            # (BB, E*H1)
    experts = jnp.dot(h1.astype(jnp.bfloat16), w2_ref[...],
                      preferred_element_type=jnp.float32) + b2
    experts = jnp.maximum(experts, 0.0)                                  # (BB, E*H2)

    # Both tasks' gate softmax without per-task lane slicing: subtracting one
    # global row max leaves each per-task softmax unchanged; the per-task
    # denominator comes from a tiny block-diagonal group-sum matmul.
    gl = xp[:, N_EXPERT * D:]                                            # (BB, T*E)
    eg = jnp.exp(gl - jnp.max(gl, axis=-1, keepdims=True))
    den = jnp.dot(eg.astype(jnp.bfloat16), gsum_ref[...],
                  preferred_element_type=jnp.float32)
    gates = eg / den                                                     # (BB, T*E)

    # Gate pooling fused into the tower hidden matmul: a 0/1 selector matmul
    # expands each gate to its expert's H2 lanes; multiply by the experts
    # (lane-replicated per task); one block-structured matmul then performs
    # sum-over-experts and the tower hidden layer together.
    gb = jnp.dot(gates.astype(jnp.bfloat16), sel_ref[...],
                 preferred_element_type=jnp.float32)                     # (BB, T*E*H2)
    prod = jnp.concatenate([experts] * N_TASK, axis=1) * gb              # (BB, T*E*H2)
    th = jnp.dot(prod.astype(jnp.bfloat16), tw1_ref[...],
                 preferred_element_type=jnp.float32) + tb1
    th = jnp.maximum(th, 0.0)                                            # (BB, T*T1)
    logits = jnp.dot(th.astype(jnp.bfloat16), two_ref[...],
                     preferred_element_type=jnp.float32) + tbo           # (BB, T)

    # Prediction heads (sigmoid on classification columns) + clamp, one store.
    col = jax.lax.broadcasted_iota(jnp.int32, logits.shape, 1)
    cls_mask = jnp.zeros(logits.shape, jnp.bool_)
    for t, typ in enumerate(TASK_TYPES):
        if typ == "classification":
            cls_mask = jnp.logical_or(cls_mask, col == t)
    y = jnp.where(cls_mask, jax.nn.sigmoid(logits), logits)
    out_ref[...] = jnp.clip(y, CLIP_MIN, CLIP_MAX)


@jax.jit
def dcn4mmoe_forward(embed_x, packed):
    wp, w1, w2, gsum, sel, tw1, two, biases = packed
    b = embed_x.shape[0]

    bb = min(b, BATCH_TILE)
    if b > BATCH_TILE:
        # Balanced tiles with >= 2 grid steps so the "parallel" batch axis
        # shards across both TensorCores on v7x; keep the tile sublane-aligned.
        n_steps = pl.cdiv(b, BATCH_TILE)
        bb = ((b + n_steps - 1) // n_steps + 7) // 8 * 8
    grid = (pl.cdiv(b, bb),)

    weight_args = [wp, w1, w2, gsum, sel, tw1, two, biases]
    weight_specs = [pl.BlockSpec(w.shape, lambda i: (0, 0)) for w in weight_args]

    return pl.pallas_call(
        mmoe_kernel,
        out_shape=jax.ShapeDtypeStruct((b, N_TASK), jnp.float32),
        grid=grid,
        in_specs=[pl.BlockSpec((bb, D), lambda i: (i, 0))] + weight_specs,
        out_specs=pl.BlockSpec((bb, N_TASK), lambda i: (i, 0)),
        compiler_params=pltpu.CompilerParams(
            dimension_semantics=("parallel",)),   # batch axis -> both TCs on v7x
    )(embed_x, *weight_args)


# ------------------- host-side packing (fold BN, block-diagonalize) ----------
def pack_params(p):
    def fold_bn(w, b, bn):
        gamma, beta, mean, var = (np.asarray(a, np.float32) for a in bn)
        a = gamma / np.sqrt(var + BN_EPS)
        return (np.asarray(w, np.float32) * a[None, :],
                np.asarray(b, np.float32) * a + (beta - mean * a))

    cross_w = np.asarray(p["cross_w"], np.float32)            # (E, D)
    cross_b = np.asarray(p["cross_b"], np.float32)            # (E, D)

    # fused x-projection: cross block (column e*D+j == cross_w[e], bias 1.0)
    # followed by both tasks' BN-folded gate weights.
    wp = np.zeros((D, P_W), np.float32)
    bp = np.zeros((P_W,), np.float32)
    for e in range(N_EXPERT):
        wp[:, e * D:(e + 1) * D] = cross_w[e][:, None]
        bp[e * D:(e + 1) * D] = 1.0
    for t in range(N_TASK):
        gw, gb = fold_bn(p["g_w"][t], p["g_b"][t], p["g_bn"][t])
        c0 = N_EXPERT * D + t * N_EXPERT
        wp[:, c0:c0 + N_EXPERT] = gw
        bp[c0:c0 + N_EXPERT] = gb

    # expert MLP, block-diagonal; cross bias folded into b1.
    w1 = np.zeros((N_EXPERT * D, N_EXPERT * H1), np.float32)
    b1 = np.zeros((N_EXPERT * H1,), np.float32)
    w2 = np.zeros((N_EXPERT * H1, N_EXPERT * H2), np.float32)
    b2 = np.zeros((N_EXPERT * H2,), np.float32)
    for e in range(N_EXPERT):
        w1e, b1e = fold_bn(p["e_w1"][e], p["e_b1"][e], p["e_bn1"][e])
        b1e = b1e + cross_b[e] @ w1e
        w2e, b2e = fold_bn(p["e_w2"][e], p["e_b2"][e], p["e_bn2"][e])
        w1[e * D:(e + 1) * D, e * H1:(e + 1) * H1] = w1e
        b1[e * H1:(e + 1) * H1] = b1e
        w2[e * H1:(e + 1) * H1, e * H2:(e + 1) * H2] = w2e
        b2[e * H2:(e + 1) * H2] = b2e

    # gate group-sum matrix and gate -> expert-lane selector (0/1 constants).
    grp = np.arange(N_TASK * N_EXPERT) // N_EXPERT
    gsum = (grp[:, None] == grp[None, :]).astype(np.float32)             # (T*E, T*E)
    sel = np.zeros((N_TASK * N_EXPERT, N_TASK * N_EXPERT * H2), np.float32)
    for te in range(N_TASK * N_EXPERT):
        sel[te, te * H2:(te + 1) * H2] = 1.0

    # towers: hidden weight replicated per (task, expert) row-block so gate
    # pooling happens inside the matmul; output layer block-diagonal.
    tw1 = np.zeros((N_TASK * N_EXPERT * H2, N_TASK * T1), np.float32)
    tb1 = np.zeros((N_TASK * T1,), np.float32)
    two = np.zeros((N_TASK * T1, N_TASK), np.float32)
    tbo = np.zeros((N_TASK,), np.float32)
    for t in range(N_TASK):
        tw1t, tb1t = fold_bn(p["t_w1"][t], p["t_b1"][t], p["t_bn"][t])
        for e in range(N_EXPERT):
            r = (t * N_EXPERT + e) * H2
            tw1[r:r + H2, t * T1:(t + 1) * T1] = tw1t
        tb1[t * T1:(t + 1) * T1] = tb1t
        two[t * T1:(t + 1) * T1, t] = np.asarray(p["t_wo"][t], np.float32)[:, 0]
        tbo[t] = float(np.asarray(p["t_bo"][t], np.float32)[0])

    # consolidated bias buffer (segments start on 128-lane boundaries).
    biases = np.zeros((1, BIAS_LEN), np.float32)
    biases[0, BP_OFF:BP_OFF + BP_LEN] = bp
    biases[0, B1_OFF:B1_OFF + B1_LEN] = b1
    biases[0, B2_OFF:B2_OFF + B2_LEN] = b2
    biases[0, TB1_OFF:TB1_OFF + TB1_LEN] = tb1
    biases[0, TBO_OFF:TBO_OFF + TBO_LEN] = tbo

    bf = lambda a: jnp.asarray(a, jnp.bfloat16)   # matmul operands in bf16
    return (bf(wp), bf(w1), bf(w2), bf(gsum), bf(sel), bf(tw1), bf(two),
            jnp.asarray(biases, jnp.float32))


# ----------------------- plain-JAX reference (for checking) ------------------
def bn_apply(x, bn):
    gamma, beta, mean, var = bn
    return (x - mean) / jnp.sqrt(var + BN_EPS) * gamma + beta


def reference_forward(embed_x, p):
    x = embed_x
    experts = []
    for e in range(N_EXPERT):
        xw = jnp.sum(x * p["cross_w"][e][None, :], axis=-1, keepdims=True)
        xc = x * xw + p["cross_b"][e][None, :] + x
        h = jnp.maximum(bn_apply(xc @ p["e_w1"][e] + p["e_b1"][e], p["e_bn1"][e]), 0.0)
        h = jnp.maximum(bn_apply(h @ p["e_w2"][e] + p["e_b2"][e], p["e_bn2"][e]), 0.0)
        experts.append(h)
    experts = jnp.stack(experts, axis=1)
    ys = []
    for t in range(N_TASK):
        g = jax.nn.softmax(bn_apply(x @ p["g_w"][t] + p["g_b"][t], p["g_bn"][t]), axis=1)
        pooled = jnp.sum(g[:, :, None] * experts, axis=1)
        h = jnp.maximum(bn_apply(pooled @ p["t_w1"][t] + p["t_b1"][t], p["t_bn"][t]), 0.0)
        y = h @ p["t_wo"][t] + p["t_bo"][t]
        if TASK_TYPES[t] == "classification":
            y = jax.nn.sigmoid(y)
        ys.append(jnp.clip(y, CLIP_MIN, CLIP_MAX))
    return jnp.concatenate(ys, axis=1)


# ------------------------------ param init -----------------------------------
def make_params(key):
    ks = iter(jax.random.split(key, 64))

    def u(shape, fan_in):
        bound = 1.0 / np.sqrt(fan_in)
        return jax.random.uniform(next(ks), shape, jnp.float32, -bound, bound)

    def bn(c):   # eval-mode BatchNorm1d with arbitrary (trained-like) stats
        return (jax.random.uniform(next(ks), (c,), jnp.float32, 0.5, 1.5),   # gamma
                jax.random.uniform(next(ks), (c,), jnp.float32, -0.1, 0.1),  # beta
                jax.random.uniform(next(ks), (c,), jnp.float32, -0.1, 0.1),  # running mean
                jax.random.uniform(next(ks), (c,), jnp.float32, 0.5, 1.5))   # running var

    return {
        # CrossNetwork (1 layer): w: Linear(D,1,bias=False) per expert; b: (D,)
        "cross_w": u((N_EXPERT, D), D),
        "cross_b": 0.05 * jax.random.normal(next(ks), (N_EXPERT, D), jnp.float32),
        # expert MLP: Linear -> BN -> ReLU (x2)
        "e_w1": u((N_EXPERT, D, H1), D), "e_b1": u((N_EXPERT, H1), D),
        "e_bn1": [bn(H1) for _ in range(N_EXPERT)],
        "e_w2": u((N_EXPERT, H1, H2), H1), "e_b2": u((N_EXPERT, H2), H1),
        "e_bn2": [bn(H2) for _ in range(N_EXPERT)],
        # gates: Linear(D, n_expert) -> BN -> softmax
        "g_w": u((N_TASK, D, N_EXPERT), D), "g_b": u((N_TASK, N_EXPERT), D),
        "g_bn": [bn(N_EXPERT) for _ in range(N_TASK)],
        # towers: Linear(H2, T1) -> BN -> ReLU -> Linear(T1, 1)
        "t_w1": u((N_TASK, H2, T1), H2), "t_b1": u((N_TASK, T1), H2),
        "t_bn": [bn(T1) for _ in range(N_TASK)],
        "t_wo": u((N_TASK, T1, 1), T1), "t_bo": u((N_TASK, 1), T1),
    }


if __name__ == "__main__":
    key = jax.random.PRNGKey(0)
    k_x, k_emb, k_p = jax.random.split(key, 3)

    # EmbeddingLayer glue (plain JAX): sparse feature indices -> embedding lookup
    # -> concat, matching embedding(x, features, squeeze_dim=True) -> (B, D).
    # TODO(synk): fuse this gather into the kernel via PrefetchScalarGridSpec indices.
    x_idx = jax.random.randint(k_x, (B, N_FEAT), 0, VOCAB, dtype=jnp.int32)
    embed_tables = 0.1 * jax.random.normal(k_emb, (N_FEAT, VOCAB, EMB_DIM), jnp.float32)
    embed_x = jnp.concatenate(
        [embed_tables[f][x_idx[:, f]] for f in range(N_FEAT)], axis=1)   # (B, D)

    params = make_params(k_p)
    packed = pack_params(params)

    out = jax.block_until_ready(dcn4mmoe_forward(embed_x, packed))
    ref = reference_forward(embed_x, params)

    assert out.shape == (B, N_TASK) and out.dtype == jnp.float32
    # bf16 MXU operands in the kernel -> compare against the f32 reference with
    # a correspondingly relaxed tolerance.
    np.testing.assert_allclose(np.asarray(out), np.asarray(ref), rtol=5e-2, atol=5e-3)

    print("KERNEL_OK")
</pallas_src>

<mosaic_0001>
module attributes {stable_mosaic.version = 11 : i64} {
  func.func @mmoe_kernel(%arg0: i32, %arg1: memref<8x32xf32, #tpu.memory_space<vmem>>, %arg2: memref<32x136xbf16, #tpu.memory_space<vmem>>, %arg3: memref<128x256xbf16, #tpu.memory_space<vmem>>, %arg4: memref<256x128xbf16, #tpu.memory_space<vmem>>, %arg5: memref<8x8xbf16, #tpu.memory_space<vmem>>, %arg6: memref<8x256xbf16, #tpu.memory_space<vmem>>, %arg7: memref<256x32xbf16, #tpu.memory_space<vmem>>, %arg8: memref<32x2xbf16, #tpu.memory_space<vmem>>, %arg9: memref<1x896xf32, #tpu.memory_space<vmem>>, %arg10: memref<8x2xf32, #tpu.memory_space<vmem>>) attributes {dimension_semantics = [#tpu.dimension_semantics<parallel>], iteration_bounds = array<i64: 1>, scalar_prefetch = 0 : i64, scratch_operands = 0 : i64, tpu.core_type = #tpu.core_type<tc>, window_params = [{transform_indices = @transform_0, window_bounds = array<i64: 8, 32>}, {pipeline_mode = #tpu.pipeline_mode<synchronous>, transform_indices = @transform_1, window_bounds = array<i64: 32, 136>}, {pipeline_mode = #tpu.pipeline_mode<synchronous>, transform_indices = @transform_2, window_bounds = array<i64: 128, 256>}, {pipeline_mode = #tpu.pipeline_mode<synchronous>, transform_indices = @transform_3, window_bounds = array<i64: 256, 128>}, {pipeline_mode = #tpu.pipeline_mode<synchronous>, transform_indices = @transform_4, window_bounds = array<i64: 8, 8>}, {pipeline_mode = #tpu.pipeline_mode<synchronous>, transform_indices = @transform_5, window_bounds = array<i64: 8, 256>}, {pipeline_mode = #tpu.pipeline_mode<synchronous>, transform_indices = @transform_6, window_bounds = array<i64: 256, 32>}, {pipeline_mode = #tpu.pipeline_mode<synchronous>, transform_indices = @transform_7, window_bounds = array<i64: 32, 2>}, {pipeline_mode = #tpu.pipeline_mode<synchronous>, transform_indices = @transform_8, window_bounds = array<i64: 1, 896>}, {transform_indices = @transform_9, window_bounds = array<i64: 8, 2>}]} {
    %c0 = arith.constant 0 : index
    %c0_0 = arith.constant 0 : index
    %0 = vector.load %arg1[%c0, %c0_0] : memref<8x32xf32, #tpu.memory_space<vmem>>, vector<8x32xf32>
    %1 = arith.truncf %0 : vector<8x32xf32> to vector<8x32xbf16>
    %c0_1 = arith.constant 0 : index
    %c0_2 = arith.constant 0 : index
    %2 = vector.load %arg9[%c0_1, %c0_2] : memref<1x896xf32, #tpu.memory_space<vmem>>, vector<1x136xf32>
    %c0_3 = arith.constant 0 : index
    %c256 = arith.constant 256 : index
    %3 = vector.load %arg9[%c0_3, %c256] : memref<1x896xf32, #tpu.memory_space<vmem>>, vector<1x256xf32>
    %c0_4 = arith.constant 0 : index
    %c512 = arith.constant 512 : index
    %4 = vector.load %arg9[%c0_4, %c512] : memref<1x896xf32, #tpu.memory_space<vmem>>, vector<1x128xf32>
    %c0_5 = arith.constant 0 : index
    %c640 = arith.constant 640 : index
    %5 = vector.load %arg9[%c0_5, %c640] : memref<1x896xf32, #tpu.memory_space<vmem>>, vector<1x32xf32>
    %c0_6 = arith.constant 0 : index
    %c768 = arith.constant 768 : index
    %6 = vector.load %arg9[%c0_6, %c768] : memref<1x896xf32, #tpu.memory_space<vmem>>, vector<1x2xf32>
    %c0_7 = arith.constant 0 : index
    %c0_8 = arith.constant 0 : index
    %7 = vector.load %arg2[%c0_7, %c0_8] : memref<32x136xbf16, #tpu.memory_space<vmem>>, vector<32x136xbf16>
    %cst = arith.constant dense<0.000000e+00> : vector<8x136xf32>
    %8 = tpu.matmul %1, %7, %cst {dimension_numbers = #tpu.dot_dimension_numbers<[1], [0], [0], [1], [0, 0, 1, 1], [], []>} : vector<8x32xbf16>, vector<32x136xbf16>, vector<8x136xf32> -> vector<8x136xf32>
    %9 = vector.broadcast %2 : vector<1x136xf32> to vector<8x136xf32>
    %10 = arith.addf %8, %9 : vector<8x136xf32>
    %11 = tpu.concatenate %0, %0, %0, %0 in 1 : vector<8x32xf32>, vector<8x32xf32>, vector<8x32xf32>, vector<8x32xf32> -> vector<8x128xf32>
    %12 = vector.extract_strided_slice %10 {offsets = [0, 0], sizes = [8, 128], strides = [1, 1]} : vector<8x136xf32> to vector<8x128xf32>
    %13 = arith.mulf %11, %12 : vector<8x128xf32>
    %14 = arith.truncf %13 : vector<8x128xf32> to vector<8x128xbf16>
    %c0_9 = arith.constant 0 : index
    %c0_10 = arith.constant 0 : index
    %15 = vector.load %arg3[%c0_9, %c0_10] : memref<128x256xbf16, #tpu.memory_space<vmem>>, vector<128x256xbf16>
    %cst_11 = arith.constant dense<0.000000e+00> : vector<8x256xf32>
    %16 = tpu.matmul %14, %15, %cst_11 {dimension_numbers = #tpu.dot_dimension_numbers<[1], [0], [0], [1], [0, 0, 1, 1], [], []>} : vector<8x128xbf16>, vector<128x256xbf16>, vector<8x256xf32> -> vector<8x256xf32>
    %17 = vector.broadcast %3 : vector<1x256xf32> to vector<8x256xf32>
    %18 = arith.addf %16, %17 : vector<8x256xf32>
    %cst_12 = arith.constant 0.000000e+00 : f32
    %19 = vector.broadcast %cst_12 : f32 to vector<8x256xf32>
    %20 = arith.maximumf %18, %19 : vector<8x256xf32>
    %21 = arith.truncf %20 : vector<8x256xf32> to vector<8x256xbf16>
    %c0_13 = arith.constant 0 : index
    %c0_14 = arith.constant 0 : index
    %22 = vector.load %arg4[%c0_13, %c0_14] : memref<256x128xbf16, #tpu.memory_space<vmem>>, vector<256x128xbf16>
    %cst_15 = arith.constant dense<0.000000e+00> : vector<8x128xf32>
    %23 = tpu.matmul %21, %22, %cst_15 {dimension_numbers = #tpu.dot_dimension_numbers<[1], [0], [0], [1], [0, 0, 1, 1], [], []>} : vector<8x256xbf16>, vector<256x128xbf16>, vector<8x128xf32> -> vector<8x128xf32>
    %24 = vector.broadcast %4 : vector<1x128xf32> to vector<8x128xf32>
    %25 = arith.addf %23, %24 : vector<8x128xf32>
    %cst_16 = arith.constant 0.000000e+00 : f32
    %26 = vector.broadcast %cst_16 : f32 to vector<8x128xf32>
    %27 = arith.maximumf %25, %26 : vector<8x128xf32>
    %28 = vector.extract_strided_slice %10 {offsets = [0, 128], sizes = [8, 8], strides = [1, 1]} : vector<8x136xf32> to vector<8x8xf32>
    %cst_17 = arith.constant dense<0xFF800000> : vector<8xf32>
    %29 = vector.multi_reduction <maximumf>, %28, %cst_17 [1] : vector<8x8xf32> to vector<8xf32>
    %30 = vector.shape_cast %29 : vector<8xf32> to vector<8x1xf32>
    %31 = vector.broadcast %30 : vector<8x1xf32> to vector<8x8xf32>
    %32 = arith.subf %28, %31 : vector<8x8xf32>
    %33 = math.exp %32 : vector<8x8xf32>
    %34 = arith.truncf %33 : vector<8x8xf32> to vector<8x8xbf16>
    %c0_18 = arith.constant 0 : index
    %c0_19 = arith.constant 0 : index
    %35 = vector.load %arg5[%c0_18, %c0_19] : memref<8x8xbf16, #tpu.memory_space<vmem>>, vector<8x8xbf16>
    %cst_20 = arith.constant dense<0.000000e+00> : vector<8x8xf32>
    %36 = tpu.matmul %34, %35, %cst_20 {dimension_numbers = #tpu.dot_dimension_numbers<[1], [0], [0], [1], [0, 0, 1, 1], [], []>} : vector<8x8xbf16>, vector<8x8xbf16>, vector<8x8xf32> -> vector<8x8xf32>
    %37 = arith.divf %33, %36 : vector<8x8xf32>
    %38 = arith.truncf %37 : vector<8x8xf32> to vector<8x8xbf16>
    %c0_21 = arith.constant 0 : index
    %c0_22 = arith.constant 0 : index
    %39 = vector.load %arg6[%c0_21, %c0_22] : memref<8x256xbf16, #tpu.memory_space<vmem>>, vector<8x256xbf16>
    %cst_23 = arith.constant dense<0.000000e+00> : vector<8x256xf32>
    %40 = tpu.matmul %38, %39, %cst_23 {dimension_numbers = #tpu.dot_dimension_numbers<[1], [0], [0], [1], [0, 0, 1, 1], [], []>} : vector<8x8xbf16>, vector<8x256xbf16>, vector<8x256xf32> -> vector<8x256xf32>
    %41 = tpu.concatenate %27, %27 in 1 : vector<8x128xf32>, vector<8x128xf32> -> vector<8x256xf32>
    %42 = arith.mulf %41, %40 : vector<8x256xf32>
    %43 = arith.truncf %42 : vector<8x256xf32> to vector<8x256xbf16>
    %c0_24 = arith.constant 0 : index
    %c0_25 = arith.constant 0 : index
    %44 = vector.load %arg7[%c0_24, %c0_25] : memref<256x32xbf16, #tpu.memory_space<vmem>>, vector<256x32xbf16>
    %cst_26 = arith.constant dense<0.000000e+00> : vector<8x32xf32>
    %45 = tpu.matmul %43, %44, %cst_26 {dimension_numbers = #tpu.dot_dimension_numbers<[1], [0], [0], [1], [0, 0, 1, 1], [], []>} : vector<8x256xbf16>, vector<256x32xbf16>, vector<8x32xf32> -> vector<8x32xf32>
    %46 = vector.broadcast %5 : vector<1x32xf32> to vector<8x32xf32>
    %47 = arith.addf %45, %46 : vector<8x32xf32>
    %cst_27 = arith.constant 0.000000e+00 : f32
    %48 = vector.broadcast %cst_27 : f32 to vector<8x32xf32>
    %49 = arith.maximumf %47, %48 : vector<8x32xf32>
    %50 = arith.truncf %49 : vector<8x32xf32> to vector<8x32xbf16>
    %c0_28 = arith.constant 0 : index
    %c0_29 = arith.constant 0 : index
    %51 = vector.load %arg8[%c0_28, %c0_29] : memref<32x2xbf16, #tpu.memory_space<vmem>>, vector<32x2xbf16>
    %cst_30 = arith.constant dense<0.000000e+00> : vector<8x2xf32>
    %52 = tpu.matmul %50, %51, %cst_30 {dimension_numbers = #tpu.dot_dimension_numbers<[1], [0], [0], [1], [0, 0, 1, 1], [], []>} : vector<8x32xbf16>, vector<32x2xbf16>, vector<8x2xf32> -> vector<8x2xf32>
    %53 = vector.broadcast %6 : vector<1x2xf32> to vector<8x2xf32>
    %54 = arith.addf %52, %53 : vector<8x2xf32>
    %55 = tpu.iota {dimensions = array<i32: 1>} : vector<8x2xi32>
    %false = arith.constant false
    %56 = vector.broadcast %false : i1 to vector<8x2xi1>
    %c0_i32 = arith.constant 0 : i32
    %57 = vector.broadcast %c0_i32 : i32 to vector<8x2xi32>
    %58 = arith.cmpi eq, %55, %57 : vector<8x2xi32>
    %59 = arith.ori %56, %58 : vector<8x2xi1>
    %60 = arith.negf %54 : vector<8x2xf32>
    %61 = math.exp %60 : vector<8x2xf32>
    %cst_31 = arith.constant 1.000000e+00 : f32
    %62 = vector.broadcast %cst_31 : f32 to vector<8x2xf32>
    %63 = arith.addf %62, %61 : vector<8x2xf32>
    %64 = arith.divf %62, %63 : vector<8x2xf32>
    %65 = arith.select %59, %64, %54 : vector<8x2xi1>, vector<8x2xf32>
    %cst_32 = arith.constant 1.000000e-15 : f32
    %cst_33 = arith.constant 1.000000e+00 : f32
    %66 = vector.broadcast %cst_32 : f32 to vector<8x2xf32>
    %67 = arith.maximumf %66, %65 : vector<8x2xf32>
    %68 = vector.broadcast %cst_33 : f32 to vector<8x2xf32>
    %69 = arith.minimumf %68, %67 : vector<8x2xf32>
    %c0_34 = arith.constant 0 : index
    %c0_35 = arith.constant 0 : index
    %70 = vector.load %arg10[%c0_34, %c0_35] : memref<8x2xf32, #tpu.memory_space<vmem>>, vector<8x2xf32>
    tpu.vector_store %arg10[%c0_34, %c0_35], %69 {strides = array<i32>} : memref<8x2xf32, #tpu.memory_space<vmem>>, vector<8x2xf32>,
    return
  }
  func.func @transform_0(%arg0: i32) -> (i32, i32) {
    %c0_i32 = arith.constant 0 : i32
    %c0_i32_0 = arith.constant 0 : i32
    return %arg0, %c0_i32 : i32, i32
  }
  func.func @transform_1(%arg0: i32) -> (i32, i32) {
    %c0_i32 = arith.constant 0 : i32
    %c0_i32_0 = arith.constant 0 : i32
    %c0_i32_1 = arith.constant 0 : i32
    return %c0_i32, %c0_i32_0 : i32, i32
  }
  func.func @transform_2(%arg0: i32) -> (i32, i32) {
    %c0_i32 = arith.constant 0 : i32
    %c0_i32_0 = arith.constant 0 : i32
    %c0_i32_1 = arith.constant 0 : i32
    return %c0_i32, %c0_i32_0 : i32, i32
  }
  func.func @transform_3(%arg0: i32) -> (i32, i32) {
    %c0_i32 = arith.constant 0 : i32
    %c0_i32_0 = arith.constant 0 : i32
    %c0_i32_1 = arith.constant 0 : i32
    return %c0_i32, %c0_i32_0 : i32, i32
  }
  func.func @transform_4(%arg0: i32) -> (i32, i32) {
    %c0_i32 = arith.constant 0 : i32
    %c0_i32_0 = arith.constant 0 : i32
    %c0_i32_1 = arith.constant 0 : i32
    return %c0_i32, %c0_i32_0 : i32, i32
  }
  func.func @transform_5(%arg0: i32) -> (i32, i32) {
    %c0_i32 = arith.constant 0 : i32
    %c0_i32_0 = arith.constant 0 : i32
    %c0_i32_1 = arith.constant 0 : i32
    return %c0_i32, %c0_i32_0 : i32, i32
  }
  func.func @transform_6(%arg0: i32) -> (i32, i32) {
    %c0_i32 = arith.constant 0 : i32
    %c0_i32_0 = arith.constant 0 : i32
    %c0_i32_1 = arith.constant 0 : i32
    return %c0_i32, %c0_i32_0 : i32, i32
  }
  func.func @transform_7(%arg0: i32) -> (i32, i32) {
    %c0_i32 = arith.constant 0 : i32
    %c0_i32_0 = arith.constant 0 : i32
    %c0_i32_1 = arith.constant 0 : i32
    return %c0_i32, %c0_i32_0 : i32, i32
  }
  func.func @transform_8(%arg0: i32) -> (i32, i32) {
    %c0_i32 = arith.constant 0 : i32
    %c0_i32_0 = arith.constant 0 : i32
    %c0_i32_1 = arith.constant 0 : i32
    return %c0_i32, %c0_i32_0 : i32, i32
  }
  func.func @transform_9(%arg0: i32) -> (i32, i32) {
    %c0_i32 = arith.constant 0 : i32
    %c0_i32_0 = arith.constant 0 : i32
    return %arg0, %c0_i32 : i32, i32
  }
}

</mosaic_0001>

<llo_original>
// kernel: dcn4mmoe_forward.1
$region0: #{dcn4mmoe_forward.1}
  #allocation0 [shape = 'u32[]', space=smem, size = 0x4, offset = 0x4, fixed_abs, tag = 'smem constant byte address 0x4 - core index']
  #allocation1 [shape = 'u32[144,128]{1,0:T(1,128)}', space=vmem, size = 0x12000, scoped, tag = 'internal scratch']
  %s0 = inlined_call_operand.vmem [shape: f32[8,32], index: 0, kind: input, shape index: {}]
  %s1 = inlined_call_operand.vmem [shape: bf16[32,136], index: 1, kind: input, shape index: {}]
  %s2 = inlined_call_operand.vmem [shape: bf16[128,256], index: 2, kind: input, shape index: {}]
  %s3 = inlined_call_operand.hbm [shape: bf16[256,128], index: 3, kind: input, shape index: {}]
  %s4 = inlined_call_operand.hbm [shape: bf16[8,8], index: 4, kind: input, shape index: {}]
  %s5 = inlined_call_operand.vmem [shape: bf16[8,256], index: 5, kind: input, shape index: {}]
  %s6 = inlined_call_operand.vmem [shape: bf16[256,32], index: 6, kind: input, shape index: {}]
  %s7 = inlined_call_operand.vmem [shape: bf16[32,2], index: 7, kind: input, shape index: {}]
  %s8 = inlined_call_operand.vmem [shape: f32[1,896], index: 8, kind: input, shape index: {}]
  %s9 = inlined_call_operand.vmem [shape: f32[8,2], index: 9, kind: output, shape index: {}]
  %s10 = sld [smem:[#allocation0]]
  $region54: #{dcn4mmoe_forward.1} parent=0
    _
  %s12 = ssub.s32 1, %s10
  %s13 = scalar_select 0, %s12, %s10
  $region1: #{dcn4mmoe_forward.1} parent=0
    #allocation2 [shape = 'u8[65536]{0}', space=vmem, size = 0x10000, scoped, tag = 'input window, operand 3, single buffered']
    #allocation3 [shape = 's32[1]{0}', space=sflag, size = 0x4, scoped, tag = 'scoped memory for dcn4mmoe_forward.1']
    #allocation4 [shape = 'u8[2048]{0}', space=vmem, size = 0x800, scoped, tag = 'input window, operand 4, single buffered']
    #allocation5 [shape = 's32[1]{0}', space=sflag, size = 0x4, scoped, tag = 'scoped memory for dcn4mmoe_forward.1']
    %14 = vsyncpa [#allocation3], 0
    %15 = vsyncpa [#allocation5], 0
    // Predicated region
    $region2: #{dcn4mmoe_forward.1} parent=1 // pred_check
      _
    $region3: #{dcn4mmoe_forward.1} parent=1 // pred_check_branch
      %17 = sbr.rel (0) target = $region5
    $region4: #{dcn4mmoe_forward.1} parent=1 // pred_region
      _
    $region5: #{dcn4mmoe_forward.1} parent=1 // pred_fallthru
      _
    // Predicated region
    $region6: #{dcn4mmoe_forward.1} parent=1 // pred_check
      _
    $region7: #{dcn4mmoe_forward.1} parent=1 // pred_check_branch
      %19 = sbr.rel (0) target = $region9
    $region8: #{dcn4mmoe_forward.1} parent=1 // pred_region
      _
    $region9: #{dcn4mmoe_forward.1} parent=1 // pred_fallthru
      _
    // Predicated region
    $region10: #{dcn4mmoe_forward.1} parent=1 // pred_check
      _
    $region11: #{dcn4mmoe_forward.1} parent=1 // pred_check_branch
      %21 = sbr.rel (0) target = $region13
    $region12: #{dcn4mmoe_forward.1} parent=1 // pred_region
      _
    $region13: #{dcn4mmoe_forward.1} parent=1 // pred_fallthru
      _
    // Predicated region
    $region14: #{dcn4mmoe_forward.1} parent=1 // pred_check
      _
    $region15: #{dcn4mmoe_forward.1} parent=1 // pred_check_branch
      %23 = sbr.rel (0) target = $region17
    $region16: #{dcn4mmoe_forward.1} parent=1 // pred_region
      %s25 = ssub.s32 2048, 2048
      %26 = vsyncadd [#allocation3], %s25
      %s27 = sshll.u32 [#allocation2], 4
      %s28 = int_to_ptr.vmem [resolvable:$true] %s27
      %33 = dma.hbm_to_vmem [thread:$0]  %s3, 2048, %s28, [#allocation3], 64, 64, 4
    $region17: #{dcn4mmoe_forward.1} parent=1 // pred_fallthru
      _
    // Predicated region
    $region18: #{dcn4mmoe_forward.1} parent=1 // pred_check
      _
    $region19: #{dcn4mmoe_forward.1} parent=1 // pred_check_branch
      %35 = sbr.rel (0) target = $region21
    $region20: #{dcn4mmoe_forward.1} parent=1 // pred_region
      %s37 = ssub.s32 64, 64
      %38 = vsyncadd [#allocation5], %s37
      %s40 = sshll.u32 [#allocation4], 4
      %s41 = int_to_ptr.vmem [resolvable:$true] %s40
      %43 = dma.hbm_to_vmem [thread:$0]  %s4, 64, %s41, [#allocation5]
    $region21: #{dcn4mmoe_forward.1} parent=1 // pred_fallthru
      _
    // Predicated region
    $region22: #{dcn4mmoe_forward.1} parent=1 // pred_check
      _
    $region23: #{dcn4mmoe_forward.1} parent=1 // pred_check_branch
      %45 = sbr.rel (0) target = $region25
    $region24: #{dcn4mmoe_forward.1} parent=1 // pred_region
      _
    $region25: #{dcn4mmoe_forward.1} parent=1 // pred_fallthru
      _
    // Predicated region
    $region26: #{dcn4mmoe_forward.1} parent=1 // pred_check
      _
    $region27: #{dcn4mmoe_forward.1} parent=1 // pred_check_branch
      %47 = sbr.rel (0) target = $region29
    $region28: #{dcn4mmoe_forward.1} parent=1 // pred_region
      _
    $region29: #{dcn4mmoe_forward.1} parent=1 // pred_fallthru
      _
    // Predicated region
    $region30: #{dcn4mmoe_forward.1} parent=1 // pred_check
      _
    $region31: #{dcn4mmoe_forward.1} parent=1 // pred_check_branch
      %49 = sbr.rel (0) target = $region33
    $region32: #{dcn4mmoe_forward.1} parent=1 // pred_region
      _
    $region33: #{dcn4mmoe_forward.1} parent=1 // pred_fallthru
      _
    // Predicated region
    $region34: #{dcn4mmoe_forward.1} parent=1 // pred_check
      _
    $region35: #{dcn4mmoe_forward.1} parent=1 // pred_check_branch
      %51 = sbr.rel (0) target = $region37
    $region36: #{dcn4mmoe_forward.1} parent=1 // pred_region
      _
    $region37: #{dcn4mmoe_forward.1} parent=1 // pred_fallthru
      _
    // Predicated region
    $region38: #{dcn4mmoe_forward.1} parent=1 // pred_check
      _
    $region39: #{dcn4mmoe_forward.1} parent=1 // pred_check_branch
      %53 = sbr.rel (0) target = $region41
    $region40: #{dcn4mmoe_forward.1} parent=1 // pred_region
      %54 = dma.done [#allocation3], 2048
    $region41: #{dcn4mmoe_forward.1} parent=1 // pred_fallthru
      _
    // Predicated region
    $region42: #{dcn4mmoe_forward.1} parent=1 // pred_check
      _
    $region43: #{dcn4mmoe_forward.1} parent=1 // pred_check_branch
      %56 = sbr.rel (0) target = $region45
    $region44: #{dcn4mmoe_forward.1} parent=1 // pred_region
      %57 = dma.done [#allocation5], 64
    $region45: #{dcn4mmoe_forward.1} parent=1 // pred_fallthru
      _
    %v59 = vld [vmem:[%s0] sm:$0xff]
    %v60 = vpack.c.bf16 %v59, %v59
    %v61 = vld [vmem:[%s8] sm:$0x3]
    %v62 = vld [vmem:[%s8 + $0x2] sm:$0x3]
    %v63 = vld [vmem:[%s8 + $0x4] sm:$0x1]
    %v64 = vld [vmem:[%s8 + $0x5] sm:$0x1]
    %v65 = vld [vmem:[%s8 + $0x6] sm:$0x1]
    %v66 = vld [vmem:[%s1] sm:$0xff]
    %v67 = vld [vmem:[%s1 + $0x8] sm:$0xff]
    %v68 = vld [vmem:[%s1 + $0x10] sm:$0xff]
    %v69 = vld [vmem:[%s1 + $0x18] sm:$0xff]
    %v71 = vlaneseq
    %v72 = vshrl.u32 %v71, 7
    %v73 = vsub.s32 0, %v72
    %v74 = vrot.slane %v61, %v73
    %v75 = vlaneseq
    %v76 = vshrl.u32 %v75, 7
    %v77 = vsub.s32 1, %v76
    %v78 = vrot.slane %v61, %v77
    %v85 = vunpack.c.l.b16 %v66
    %v86 = vunpack.c.h.b16 %v66
    %v87 = vunpack.c.l.b16 %v67
    %v88 = vunpack.c.h.b16 %v67
    %v89 = vunpack.c.l.b16 %v68
    %v90 = vunpack.c.h.b16 %v68
    %v91 = vunpack.c.l.b16 %v69
    %v92 = vunpack.c.h.b16 %v69
    %v93 = vpack.c.b16 %v87, %v85
    %v94 = vpack.c.b16 %v88, %v86
    %v95 = vpack.c.b16 %v91, %v89
    %v96 = vpack.c.b16 %v92, %v90
    %vm101 = vcmask 261120
    %v103 = vsel %vm101, %v60, 0
    %105 = vmatprep.subr.bf16.mxu0 0
    %106 = vmatpush1.bf16.msra.mxu0 0
    %107 = vmatprep.subr.bf16.mxu0 0
    %108 = vmatpush1.bf16.msra.mxu0 0
    %109 = vmatprep.subr.bf16.mxu0 0
    %110 = vmatpush1.bf16.msra.mxu0 0
    %111 = vmatprep.subr.bf16.mxu0 0
    %112 = vmatpush1.bf16.msra.mxu0 0
    %113 = vmatprep.subr.bf16.mxu0 0
    %114 = vmatpush1.bf16.msra.mxu0 0
    %115 = vmatprep.subr.bf16.mxu0 0
    %116 = vmatpush1.bf16.msra.mxu0 0
    %117 = vmatprep.subr.bf16.mxu0 %v96
    %118 = vmatpush1.bf16.msra.mxu0 %v95
    %119 = vmatprep.subr.bf16.mxu0 %v94
    %120 = vmatpush1.bf16.msra.mxu0 %v93
    %121 = vmatprep.subr.bf16.mxu0 0
    %122 = vmatpush2.bf16.msra.mxu0 0
    %123 = vmatprep.subr.bf16.mxu0 0
    %124 = vmatpush2.bf16.msra.mxu0 0
    %125 = vmatprep.subr.bf16.mxu0 0
    %126 = vmatpush2.bf16.msra.mxu0 0
    %127 = vmatprep.subr.bf16.mxu0 0
    %128 = vmatpush2.bf16.msra.mxu0 0
    %129 = vmatprep.subr.bf16.mxu0 0
    %130 = vmatpush2.bf16.msra.mxu0 0
    %131 = vmatprep.subr.bf16.mxu0 0
    %132 = vmatpush2.bf16.msra.mxu0 0
    %133 = vmatprep.subr.bf16.mxu0 0
    %134 = vmatpush2.bf16.msra.mxu0 0
    %135 = vmatprep.subr.bf16.mxu0 0
    %136 = vmatpush2.bf16.msra.mxu0 0
    %137 = vmatprep.mubr.bf16.mxu0 0
    %138 = vmatmul.mubr.bf16.gmra.mxu0 %v103
    %v139 = vpop.f32.mrf.mxu0
    %v140 = vadd.f32 %v74, %v139
    %v141 = vpop.f32.mrf.mxu0
    %v142 = vadd.f32 %v78, %v141
    %v143 = vpop.f32.mrf.mxu0
    %v144 = vpop.f32.mrf.mxu0
    %145 = vdwg.mxu0
    %147 = vrot.lane.b32.xlu0 %v59, 32
    %v148 = vpop.permute.xlu0 %147
    %150 = vrot.lane.b32.xlu0 %v59, 64
    %v151 = vpop.permute.xlu0 %150
    %153 = vrot.lane.b32.xlu0 %v59, 96
    %v154 = vpop.permute.xlu0 %153
    %v156 = vsel %vm101, %v59, %v148
    %vm157 = vcmask 523264
    %v158 = vsel %vm157, %v156, %v151
    %vm159 = vcmask 785408
    %v160 = vsel %vm159, %v158, %v154
    %v161 = vmul.f32 %v160, %v140
    %v162 = vpack.c.bf16 %v161, %v161
    %v163 = vld [vmem:[%s2] sm:$0xff]
    %v164 = vld [vmem:[%s2 + $0x8] sm:$0xff]
    %v165 = vld [vmem:[%s2 + $0x10] sm:$0xff]
    %v166 = vld [vmem:[%s2 + $0x18] sm:$0xff]
    %v167 = vld [vmem:[%s2 + $0x20] sm:$0xff]
    %v168 = vld [vmem:[%s2 + $0x28] sm:$0xff]
    %v169 = vld [vmem:[%s2 + $0x30] sm:$0xff]
    %v170 = vld [vmem:[%s2 + $0x38] sm:$0xff]
    %v171 = vld [vmem:[%s2 + $0x40] sm:$0xff]
    %v172 = vld [vmem:[%s2 + $0x48] sm:$0xff]
    %v173 = vld [vmem:[%s2 + $0x50] sm:$0xff]
    %v174 = vld [vmem:[%s2 + $0x58] sm:$0xff]
    %v175 = vld [vmem:[%s2 + $0x60] sm:$0xff]
    %v176 = vld [vmem:[%s2 + $0x68] sm:$0xff]
    %v177 = vld [vmem:[%s2 + $0x70] sm:$0xff]
    %v178 = vld [vmem:[%s2 + $0x78] sm:$0xff]
    %v180 = vlaneseq
    %v181 = vshrl.u32 %v180, 7
    %v182 = vsub.s32 0, %v181
    %v183 = vrot.slane %v62, %v182
    %v184 = vlaneseq
    %v185 = vshrl.u32 %v184, 7
    %v186 = vsub.s32 1, %v185
    %v187 = vrot.slane %v62, %v186
    %v206 = vunpack.c.l.b16 %v163
    %v207 = vunpack.c.h.b16 %v163
    %v208 = vunpack.c.l.b16 %v164
    %v209 = vunpack.c.h.b16 %v164
    %v210 = vunpack.c.l.b16 %v165
    %v211 = vunpack.c.h.b16 %v165
    %v212 = vunpack.c.l.b16 %v166
    %v213 = vunpack.c.h.b16 %v166
    %v214 = vunpack.c.l.b16 %v167
    %v215 = vunpack.c.h.b16 %v167
    %v216 = vunpack.c.l.b16 %v168
    %v217 = vunpack.c.h.b16 %v168
    %v218 = vunpack.c.l.b16 %v169
    %v219 = vunpack.c.h.b16 %v169
    %v220 = vunpack.c.l.b16 %v170
    %v221 = vunpack.c.h.b16 %v170
    %v222 = vunpack.c.l.b16 %v171
    %v223 = vunpack.c.h.b16 %v171
    %v224 = vunpack.c.l.b16 %v172
    %v225 = vunpack.c.h.b16 %v172
    %v226 = vunpack.c.l.b16 %v173
    %v227 = vunpack.c.h.b16 %v173
    %v228 = vunpack.c.l.b16 %v174
    %v229 = vunpack.c.h.b16 %v174
    %v230 = vunpack.c.l.b16 %v175
    %v231 = vunpack.c.h.b16 %v175
    %v232 = vunpack.c.l.b16 %v176
    %v233 = vunpack.c.h.b16 %v176
    %v234 = vunpack.c.l.b16 %v177
    %v235 = vunpack.c.h.b16 %v177
    %v236 = vunpack.c.l.b16 %v178
    %v237 = vunpack.c.h.b16 %v178
    %v238 = vpack.c.b16 %v208, %v206
    %v239 = vpack.c.b16 %v209, %v207
    %v240 = vpack.c.b16 %v212, %v210
    %v241 = vpack.c.b16 %v213, %v211
    %v242 = vpack.c.b16 %v216, %v214
    %v243 = vpack.c.b16 %v217, %v215
    %v244 = vpack.c.b16 %v220, %v218
    %v245 = vpack.c.b16 %v221, %v219
    %v246 = vpack.c.b16 %v224, %v222
    %v247 = vpack.c.b16 %v225, %v223
    %v248 = vpack.c.b16 %v228, %v226
    %v249 = vpack.c.b16 %v229, %v227
    %v250 = vpack.c.b16 %v232, %v230
    %v251 = vpack.c.b16 %v233, %v231
    %v252 = vpack.c.b16 %v236, %v234
    %v253 = vpack.c.b16 %v237, %v235
    %270 = vmatprep.subr.bf16.mxu0 %v253
    %271 = vmatpush1.bf16.msra.mxu0 %v252
    %272 = vmatprep.subr.bf16.mxu0 %v251
    %273 = vmatpush1.bf16.msra.mxu0 %v250
    %274 = vmatprep.subr.bf16.mxu0 %v249
    %275 = vmatpush1.bf16.msra.mxu0 %v248
    %276 = vmatprep.subr.bf16.mxu0 %v247
    %277 = vmatpush1.bf16.msra.mxu0 %v246
    %278 = vmatprep.subr.bf16.mxu0 %v245
    %279 = vmatpush1.bf16.msra.mxu0 %v244
    %280 = vmatprep.subr.bf16.mxu0 %v243
    %281 = vmatpush1.bf16.msra.mxu0 %v242
    %282 = vmatprep.subr.bf16.mxu0 %v241
    %283 = vmatpush1.bf16.msra.mxu0 %v240
    %284 = vmatprep.subr.bf16.mxu0 %v239
    %285 = vmatpush1.bf16.msra.mxu0 %v238
    %286 = vmatprep.subr.bf16.mxu0 0
    %287 = vmatpush2.bf16.msra.mxu0 0
    %288 = vmatprep.subr.bf16.mxu0 0
    %289 = vmatpush2.bf16.msra.mxu0 0
    %290 = vmatprep.subr.bf16.mxu0 0
    %291 = vmatpush2.bf16.msra.mxu0 0
    %292 = vmatprep.subr.bf16.mxu0 0
    %293 = vmatpush2.bf16.msra.mxu0 0
    %294 = vmatprep.subr.bf16.mxu0 0
    %295 = vmatpush2.bf16.msra.mxu0 0
    %296 = vmatprep.subr.bf16.mxu0 0
    %297 = vmatpush2.bf16.msra.mxu0 0
    %298 = vmatprep.subr.bf16.mxu0 0
    %299 = vmatpush2.bf16.msra.mxu0 0
    %300 = vmatprep.subr.bf16.mxu0 0
    %301 = vmatpush2.bf16.msra.mxu0 0
    %302 = vmatprep.mubr.bf16.mxu0 0
    %303 = vmatmul.mubr.bf16.gmra.mxu0 %v162
    %v304 = vpop.f32.mrf.mxu0
    %v305 = vadd.f32 %v183, %v304
    %v306 = vpop.f32.mrf.mxu0
    %v307 = vadd.f32 %v187, %v306
    %v308 = vpop.f32.mrf.mxu0
    %v309 = vpop.f32.mrf.mxu0
    %310 = vdwg.mxu0
    %v311 = vmax.f32 %v305, 0.0
    %v312 = vmax.f32 %v307, 0.0
    %v313 = vpack.c.bf16 %v311, %v311
    %v314 = vpack.c.bf16 %v312, %v312
    %v315 = vld [vmem:[#allocation2] sm:$0xf]
    %v316 = vld [vmem:[#allocation2 + $0x4] sm:$0xf]
    %v317 = vld [vmem:[#allocation2 + $0x8] sm:$0xf]
    %v318 = vld [vmem:[#allocation2 + $0xc] sm:$0xf]
    %v319 = vld [vmem:[#allocation2 + $0x10] sm:$0xf]
    %v320 = vld [vmem:[#allocation2 + $0x14] sm:$0xf]
    %v321 = vld [vmem:[#allocation2 + $0x18] sm:$0xf]
    %v322 = vld [vmem:[#allocation2 + $0x1c] sm:$0xf]
    %v323 = vld [vmem:[#allocation2 + $0x20] sm:$0xf]
    %v324 = vld [vmem:[#allocation2 + $0x24] sm:$0xf]
    %v325 = vld [vmem:[#allocation2 + $0x28] sm:$0xf]
    %v326 = vld [vmem:[#allocation2 + $0x2c] sm:$0xf]
    %v327 = vld [vmem:[#allocation2 + $0x30] sm:$0xf]
    %v328 = vld [vmem:[#allocation2 + $0x34] sm:$0xf]
    %v329 = vld [vmem:[#allocation2 + $0x38] sm:$0xf]
    %v330 = vld [vmem:[#allocation2 + $0x3c] sm:$0xf]
    %v331 = vld [vmem:[#allocation2 + $0x40] sm:$0xf]
    %v332 = vld [vmem:[#allocation2 + $0x44] sm:$0xf]
    %v333 = vld [vmem:[#allocation2 + $0x48] sm:$0xf]
    %v334 = vld [vmem:[#allocation2 + $0x4c] sm:$0xf]
    %v335 = vld [vmem:[#allocation2 + $0x50] sm:$0xf]
    %v336 = vld [vmem:[#allocation2 + $0x54] sm:$0xf]
    %v337 = vld [vmem:[#allocation2 + $0x58] sm:$0xf]
    %v338 = vld [vmem:[#allocation2 + $0x5c] sm:$0xf]
    %v339 = vld [vmem:[#allocation2 + $0x60] sm:$0xf]
    %v340 = vld [vmem:[#allocation2 + $0x64] sm:$0xf]
    %v341 = vld [vmem:[#allocation2 + $0x68] sm:$0xf]
    %v342 = vld [vmem:[#allocation2 + $0x6c] sm:$0xf]
    %v343 = vld [vmem:[#allocation2 + $0x70] sm:$0xf]
    %v344 = vld [vmem:[#allocation2 + $0x74] sm:$0xf]
    %v345 = vld [vmem:[#allocation2 + $0x78] sm:$0xf]
    %v346 = vld [vmem:[#allocation2 + $0x7c] sm:$0xf]
    %v348 = vlaneseq
    %v349 = vshrl.u32 %v348, 7
    %v350 = vsub.s32 0, %v349
    %v351 = vrot.slane %v63, %v350
    %v385 = vunpack.c.l.b16 %v315
    %v386 = vunpack.c.l.b16 %v316
    %v387 = vunpack.c.l.b16 %v317
    %v388 = vunpack.c.l.b16 %v318
    %v389 = vunpack.c.l.b16 %v319
    %v390 = vunpack.c.l.b16 %v320
    %v391 = vunpack.c.l.b16 %v321
    %v392 = vunpack.c.l.b16 %v322
    %v393 = vunpack.c.l.b16 %v323
    %v394 = vunpack.c.l.b16 %v324
    %v395 = vunpack.c.l.b16 %v325
    %v396 = vunpack.c.l.b16 %v326
    %v397 = vunpack.c.l.b16 %v327
    %v398 = vunpack.c.l.b16 %v328
    %v399 = vunpack.c.l.b16 %v329
    %v400 = vunpack.c.l.b16 %v330
    %v401 = vunpack.c.l.b16 %v331
    %v402 = vunpack.c.l.b16 %v332
    %v403 = vunpack.c.l.b16 %v333
    %v404 = vunpack.c.l.b16 %v334
    %v405 = vunpack.c.l.b16 %v335
    %v406 = vunpack.c.l.b16 %v336
    %v407 = vunpack.c.l.b16 %v337
    %v408 = vunpack.c.l.b16 %v338
    %v409 = vunpack.c.l.b16 %v339
    %v410 = vunpack.c.l.b16 %v340
    %v411 = vunpack.c.l.b16 %v341
    %v412 = vunpack.c.l.b16 %v342
    %v413 = vunpack.c.l.b16 %v343
    %v414 = vunpack.c.l.b16 %v344
    %v415 = vunpack.c.l.b16 %v345
    %v416 = vunpack.c.l.b16 %v346
    %v417 = vpack.c.b16 %v386, %v385
    %v418 = vpack.c.b16 %v388, %v387
    %v419 = vpack.c.b16 %v390, %v389
    %v420 = vpack.c.b16 %v392, %v391
    %v421 = vpack.c.b16 %v394, %v393
    %v422 = vpack.c.b16 %v396, %v395
    %v423 = vpack.c.b16 %v398, %v397
    %v424 = vpack.c.b16 %v400, %v399
    %v425 = vpack.c.b16 %v402, %v401
    %v426 = vpack.c.b16 %v404, %v403
    %v427 = vpack.c.b16 %v406, %v405
    %v428 = vpack.c.b16 %v408, %v407
    %v429 = vpack.c.b16 %v410, %v409
    %v430 = vpack.c.b16 %v412, %v411
    %v431 = vpack.c.b16 %v414, %v413
    %v432 = vpack.c.b16 %v416, %v415
    %449 = vmatprep.subr.bf16.mxu0 0
    %450 = vmatpush1.bf16.msra.mxu0 %v424
    %451 = vmatprep.subr.bf16.mxu0 0
    %452 = vmatpush1.bf16.msra.mxu0 %v423
    %453 = vmatprep.subr.bf16.mxu0 0
    %454 = vmatpush1.bf16.msra.mxu0 %v422
    %455 = vmatprep.subr.bf16.mxu0 0
    %456 = vmatpush1.bf16.msra.mxu0 %v421
    %457 = vmatprep.subr.bf16.mxu0 0
    %458 = vmatpush1.bf16.msra.mxu0 %v420
    %459 = vmatprep.subr.bf16.mxu0 0
    %460 = vmatpush1.bf16.msra.mxu0 %v419
    %461 = vmatprep.subr.bf16.mxu0 0
    %462 = vmatpush1.bf16.msra.mxu0 %v418
    %463 = vmatprep.subr.bf16.mxu0 0
    %464 = vmatpush1.bf16.msra.mxu0 %v417
    %465 = vmatprep.subr.bf16.mxu0 0
    %466 = vmatpush2.bf16.msra.mxu0 %v432
    %467 = vmatprep.subr.bf16.mxu0 0
    %468 = vmatpush2.bf16.msra.mxu0 %v431
    %469 = vmatprep.subr.bf16.mxu0 0
    %470 = vmatpush2.bf16.msra.mxu0 %v430
    %471 = vmatprep.subr.bf16.mxu0 0
    %472 = vmatpush2.bf16.msra.mxu0 %v429
    %473 = vmatprep.subr.bf16.mxu0 0
    %474 = vmatpush2.bf16.msra.mxu0 %v428
    %475 = vmatprep.subr.bf16.mxu0 0
    %476 = vmatpush2.bf16.msra.mxu0 %v427
    %477 = vmatprep.subr.bf16.mxu0 0
    %478 = vmatpush2.bf16.msra.mxu0 %v426
    %479 = vmatprep.subr.bf16.mxu0 0
    %480 = vmatpush2.bf16.msra.mxu0 %v425
    %481 = vmatprep.mubr.bf16.mxu0 %v314
    %482 = vmatmul.mubr.bf16.gmra.mxu0 %v313
    %v483 = vpop.f32.mrf.mxu0
    %v484 = vadd.f32 %v351, %v483
    %v485 = vpop.f32.mrf.mxu0
    %v486 = vpop.f32.mrf.mxu0
    %v487 = vpop.f32.mrf.mxu0
    %488 = vdwg.mxu0
    %v489 = vmax.f32 %v484, 0.0
    %vm490 = vcmask 64512
    %v491 = vsel %vm490, %v142, -inf
    %492 = vmax.xlane.f32.xlu0 %v491
    %v493 = vpop.xlane.xlu0 %492
    %v494 = vsub.f32 %v142, %v493
    %v495 = vmul.f32 %v494, 1.442695
    %v496 = vpow.pop %v495
    %v497 = vpack.c.bf16 %v496, %v496
    %v498 = vld [vmem:[#allocation4] sm:$0xf]
    %v500 = vsel %vm490, %v497, 0
    %vm502 = vcmask 1043456
    %v504 = vsel %vm502, %v498, 0
    %506 = vmatprep.subr.bf16.mxu0 0
    %507 = vmatpush1.bf16.msra.mxu0 0
    %508 = vmatprep.subr.bf16.mxu0 0
    %509 = vmatpush1.bf16.msra.mxu0 0
    %510 = vmatprep.subr.bf16.mxu0 0
    %511 = vmatpush1.bf16.msra.mxu0 0
    %512 = vmatprep.subr.bf16.mxu0 0
    %513 = vmatpush1.bf16.msra.mxu0 0
    %514 = vmatprep.subr.bf16.mxu0 0
    %515 = vmatpush1.bf16.msra.mxu0 0
    %516 = vmatprep.subr.bf16.mxu0 0
    %517 = vmatpush1.bf16.msra.mxu0 0
    %518 = vmatprep.subr.bf16.mxu0 0
    %519 = vmatpush1.bf16.msra.mxu0 0
    %520 = vmatprep.subr.bf16.mxu0 0
    %521 = vmatpush1.bf16.msra.mxu0 %v504
    %522 = vmatprep.subr.bf16.mxu0 0
    %523 = vmatpush2.bf16.msra.mxu0 0
    %524 = vmatprep.subr.bf16.mxu0 0
    %525 = vmatpush2.bf16.msra.mxu0 0
    %526 = vmatprep.subr.bf16.mxu0 0
    %527 = vmatpush2.bf16.msra.mxu0 0
    %528 = vmatprep.subr.bf16.mxu0 0
    %529 = vmatpush2.bf16.msra.mxu0 0
    %530 = vmatprep.subr.bf16.mxu0 0
    %531 = vmatpush2.bf16.msra.mxu0 0
    %532 = vmatprep.subr.bf16.mxu0 0
    %533 = vmatpush2.bf16.msra.mxu0 0
    %534 = vmatprep.subr.bf16.mxu0 0
    %535 = vmatpush2.bf16.msra.mxu0 0
    %536 = vmatprep.subr.bf16.mxu0 0
    %537 = vmatpush2.bf16.msra.mxu0 0
    %538 = vmatprep.mubr.bf16.mxu0 0
    %539 = vmatmul.mubr.bf16.gmra.mxu0 %v500
    %v540 = vpop.f32.mrf.mxu0
    %v541 = vadd.f32 0.0, %v540
    %v542 = vpop.f32.mrf.mxu0
    %v543 = vpop.f32.mrf.mxu0
    %v544 = vpop.f32.mrf.mxu0
    %545 = vdwg.mxu0
    %v546 = vrcp.pop %v541
    %v547 = vmul.f32 %v496, %v546
    %v548 = vpack.c.bf16 %v547, %v547
    %v549 = vld [vmem:[%s5] sm:$0xff]
    %v551 = vunpack.c.l.b16 %v549
    %v552 = vunpack.c.h.b16 %v549
    %v553 = vpack.c.b16 %v551, %v551
    %v554 = vpack.c.b16 %v552, %v552
    %v556 = vsel %vm490, %v548, 0
    %v559 = vsel %vm502, %v553, 0
    %v562 = vsel %vm502, %v554, 0
    %564 = vmatprep.subr.bf16.mxu0 0
    %565 = vmatpush1.bf16.msra.mxu0 0
    %566 = vmatprep.subr.bf16.mxu0 0
    %567 = vmatpush1.bf16.msra.mxu0 0
    %568 = vmatprep.subr.bf16.mxu0 0
    %569 = vmatpush1.bf16.msra.mxu0 0
    %570 = vmatprep.subr.bf16.mxu0 0
    %571 = vmatpush1.bf16.msra.mxu0 0
    %572 = vmatprep.subr.bf16.mxu0 0
    %573 = vmatpush1.bf16.msra.mxu0 0
    %574 = vmatprep.subr.bf16.mxu0 0
    %575 = vmatpush1.bf16.msra.mxu0 0
    %576 = vmatprep.subr.bf16.mxu0 0
    %577 = vmatpush1.bf16.msra.mxu0 0
    %578 = vmatprep.subr.bf16.mxu0 %v562
    %579 = vmatpush1.bf16.msra.mxu0 %v559
    %580 = vmatprep.subr.bf16.mxu0 0
    %581 = vmatpush2.bf16.msra.mxu0 0
    %582 = vmatprep.subr.bf16.mxu0 0
    %583 = vmatpush2.bf16.msra.mxu0 0
    %584 = vmatprep.subr.bf16.mxu0 0
    %585 = vmatpush2.bf16.msra.mxu0 0
    %586 = vmatprep.subr.bf16.mxu0 0
    %587 = vmatpush2.bf16.msra.mxu0 0
    %588 = vmatprep.subr.bf16.mxu0 0
    %589 = vmatpush2.bf16.msra.mxu0 0
    %590 = vmatprep.subr.bf16.mxu0 0
    %591 = vmatpush2.bf16.msra.mxu0 0
    %592 = vmatprep.subr.bf16.mxu0 0
    %593 = vmatpush2.bf16.msra.mxu0 0
    %594 = vmatprep.subr.bf16.mxu0 0
    %595 = vmatpush2.bf16.msra.mxu0 0
    %596 = vmatprep.mubr.bf16.mxu0 0
    %597 = vmatmul.mubr.bf16.gmra.mxu0 %v556
    %v598 = vpop.f32.mrf.mxu0
    %v599 = vadd.f32 0.0, %v598
    %v600 = vpop.f32.mrf.mxu0
    %v601 = vadd.f32 0.0, %v600
    %v602 = vpop.f32.mrf.mxu0
    %v603 = vpop.f32.mrf.mxu0
    %604 = vdwg.mxu0
    %v605 = vmul.f32 %v489, %v599
    %v606 = vmul.f32 %v489, %v601
    %v607 = vpack.c.bf16 %v605, %v605
    %v608 = vpack.c.bf16 %v606, %v606
    %v609 = vld [vmem:[%s6] sm:$0xf]
    %v610 = vld [vmem:[%s6 + $0x4] sm:$0xf]
    %v611 = vld [vmem:[%s6 + $0x8] sm:$0xf]
    %v612 = vld [vmem:[%s6 + $0xc] sm:$0xf]
    %v613 = vld [vmem:[%s6 + $0x10] sm:$0xf]
    %v614 = vld [vmem:[%s6 + $0x14] sm:$0xf]
    %v615 = vld [vmem:[%s6 + $0x18] sm:$0xf]
    %v616 = vld [vmem:[%s6 + $0x1c] sm:$0xf]
    %v617 = vld [vmem:[%s6 + $0x20] sm:$0xf]
    %v618 = vld [vmem:[%s6 + $0x24] sm:$0xf]
    %v619 = vld [vmem:[%s6 + $0x28] sm:$0xf]
    %v620 = vld [vmem:[%s6 + $0x2c] sm:$0xf]
    %v621 = vld [vmem:[%s6 + $0x30] sm:$0xf]
    %v622 = vld [vmem:[%s6 + $0x34] sm:$0xf]
    %v623 = vld [vmem:[%s6 + $0x38] sm:$0xf]
    %v624 = vld [vmem:[%s6 + $0x3c] sm:$0xf]
    %v625 = vld [vmem:[%s6 + $0x40] sm:$0xf]
    %v626 = vld [vmem:[%s6 + $0x44] sm:$0xf]
    %v627 = vld [vmem:[%s6 + $0x48] sm:$0xf]
    %v628 = vld [vmem:[%s6 + $0x4c] sm:$0xf]
    %v629 = vld [vmem:[%s6 + $0x50] sm:$0xf]
    %v630 = vld [vmem:[%s6 + $0x54] sm:$0xf]
    %v631 = vld [vmem:[%s6 + $0x58] sm:$0xf]
    %v632 = vld [vmem:[%s6 + $0x5c] sm:$0xf]
    %v633 = vld [vmem:[%s6 + $0x60] sm:$0xf]
    %v634 = vld [vmem:[%s6 + $0x64] sm:$0xf]
    %v635 = vld [vmem:[%s6 + $0x68] sm:$0xf]
    %v636 = vld [vmem:[%s6 + $0x6c] sm:$0xf]
    %v637 = vld [vmem:[%s6 + $0x70] sm:$0xf]
    %v638 = vld [vmem:[%s6 + $0x74] sm:$0xf]
    %v639 = vld [vmem:[%s6 + $0x78] sm:$0xf]
    %v640 = vld [vmem:[%s6 + $0x7c] sm:$0xf]
    %v642 = vlaneseq
    %v643 = vshrl.u32 %v642, 7
    %v644 = vsub.s32 0, %v643
    %v645 = vrot.slane %v64, %v644
    %v679 = vunpack.c.l.b16 %v609
    %v680 = vunpack.c.l.b16 %v610
    %v681 = vunpack.c.l.b16 %v611
    %v682 = vunpack.c.l.b16 %v612
    %v683 = vunpack.c.l.b16 %v613
    %v684 = vunpack.c.l.b16 %v614
    %v685 = vunpack.c.l.b16 %v615
    %v686 = vunpack.c.l.b16 %v616
    %v687 = vunpack.c.l.b16 %v617
    %v688 = vunpack.c.l.b16 %v618
    %v689 = vunpack.c.l.b16 %v619
    %v690 = vunpack.c.l.b16 %v620
    %v691 = vunpack.c.l.b16 %v621
    %v692 = vunpack.c.l.b16 %v622
    %v693 = vunpack.c.l.b16 %v623
    %v694 = vunpack.c.l.b16 %v624
    %v695 = vunpack.c.l.b16 %v625
    %v696 = vunpack.c.l.b16 %v626
    %v697 = vunpack.c.l.b16 %v627
    %v698 = vunpack.c.l.b16 %v628
    %v699 = vunpack.c.l.b16 %v629
    %v700 = vunpack.c.l.b16 %v630
    %v701 = vunpack.c.l.b16 %v631
    %v702 = vunpack.c.l.b16 %v632
    %v703 = vunpack.c.l.b16 %v633
    %v704 = vunpack.c.l.b16 %v634
    %v705 = vunpack.c.l.b16 %v635
    %v706 = vunpack.c.l.b16 %v636
    %v707 = vunpack.c.l.b16 %v637
    %v708 = vunpack.c.l.b16 %v638
    %v709 = vunpack.c.l.b16 %v639
    %v710 = vunpack.c.l.b16 %v640
    %v711 = vpack.c.b16 %v680, %v679
    %v712 = vpack.c.b16 %v682, %v681
    %v713 = vpack.c.b16 %v684, %v683
    %v714 = vpack.c.b16 %v686, %v685
    %v715 = vpack.c.b16 %v688, %v687
    %v716 = vpack.c.b16 %v690, %v689
    %v717 = vpack.c.b16 %v692, %v691
    %v718 = vpack.c.b16 %v694, %v693
    %v719 = vpack.c.b16 %v696, %v695
    %v720 = vpack.c.b16 %v698, %v697
    %v721 = vpack.c.b16 %v700, %v699
    %v722 = vpack.c.b16 %v702, %v701
    %v723 = vpack.c.b16 %v704, %v703
    %v724 = vpack.c.b16 %v706, %v705
    %v725 = vpack.c.b16 %v708, %v707
    %v726 = vpack.c.b16 %v710, %v709
    %743 = vmatprep.subr.bf16.mxu0 0
    %744 = vmatpush1.bf16.msra.mxu0 %v718
    %745 = vmatprep.subr.bf16.mxu0 0
    %746 = vmatpush1.bf16.msra.mxu0 %v717
    %747 = vmatprep.subr.bf16.mxu0 0
    %748 = vmatpush1.bf16.msra.mxu0 %v716
    %749 = vmatprep.subr.bf16.mxu0 0
    %750 = vmatpush1.bf16.msra.mxu0 %v715
    %751 = vmatprep.subr.bf16.mxu0 0
    %752 = vmatpush1.bf16.msra.mxu0 %v714
    %753 = vmatprep.subr.bf16.mxu0 0
    %754 = vmatpush1.bf16.msra.mxu0 %v713
    %755 = vmatprep.subr.bf16.mxu0 0
    %756 = vmatpush1.bf16.msra.mxu0 %v712
    %757 = vmatprep.subr.bf16.mxu0 0
    %758 = vmatpush1.bf16.msra.mxu0 %v711
    %759 = vmatprep.subr.bf16.mxu0 0
    %760 = vmatpush2.bf16.msra.mxu0 %v726
    %761 = vmatprep.subr.bf16.mxu0 0
    %762 = vmatpush2.bf16.msra.mxu0 %v725
    %763 = vmatprep.subr.bf16.mxu0 0
    %764 = vmatpush2.bf16.msra.mxu0 %v724
    %765 = vmatprep.subr.bf16.mxu0 0
    %766 = vmatpush2.bf16.msra.mxu0 %v723
    %767 = vmatprep.subr.bf16.mxu0 0
    %768 = vmatpush2.bf16.msra.mxu0 %v722
    %769 = vmatprep.subr.bf16.mxu0 0
    %770 = vmatpush2.bf16.msra.mxu0 %v721
    %771 = vmatprep.subr.bf16.mxu0 0
    %772 = vmatpush2.bf16.msra.mxu0 %v720
    %773 = vmatprep.subr.bf16.mxu0 0
    %774 = vmatpush2.bf16.msra.mxu0 %v719
    %775 = vmatprep.mubr.bf16.mxu0 %v608
    %776 = vmatmul.mubr.bf16.gmra.mxu0 %v607
    %v777 = vpop.f32.mrf.mxu0
    %v778 = vadd.f32 %v645, %v777
    %v779 = vpop.f32.mrf.mxu0
    %v780 = vpop.f32.mrf.mxu0
    %v781 = vpop.f32.mrf.mxu0
    %782 = vdwg.mxu0
    %v783 = vmax.f32 %v778, 0.0
    %v784 = vpack.c.bf16 %v783, %v783
    %v785 = vld [vmem:[%s7] sm:$0xf]
    %v786 = vld [vmem:[%s7 + $0x4] sm:$0xf]
    %v787 = vld [vmem:[%s7 + $0x8] sm:$0xf]
    %v788 = vld [vmem:[%s7 + $0xc] sm:$0xf]
    %v790 = vlaneseq
    %v791 = vshrl.u32 %v790, 7
    %v792 = vsub.s32 0, %v791
    %v793 = vrot.slane %v65, %v792
    %v799 = vunpack.c.l.b16 %v785
    %v800 = vunpack.c.l.b16 %v786
    %v801 = vunpack.c.l.b16 %v787
    %v802 = vunpack.c.l.b16 %v788
    %v803 = vpack.c.b16 %v800, %v799
    %v804 = vpack.c.b16 %v802, %v801
    %v808 = vsel %vm101, %v784, 0
    %810 = vmatprep.subr.bf16.mxu0 0
    %811 = vmatpush1.bf16.msra.mxu0 0
    %812 = vmatprep.subr.bf16.mxu0 0
    %813 = vmatpush1.bf16.msra.mxu0 0
    %814 = vmatprep.subr.bf16.mxu0 0
    %815 = vmatpush1.bf16.msra.mxu0 0
    %816 = vmatprep.subr.bf16.mxu0 0
    %817 = vmatpush1.bf16.msra.mxu0 0
    %818 = vmatprep.subr.bf16.mxu0 0
    %819 = vmatpush1.bf16.msra.mxu0 0
    %820 = vmatprep.subr.bf16.mxu0 0
    %821 = vmatpush1.bf16.msra.mxu0 0
    %822 = vmatprep.subr.bf16.mxu0 0
    %823 = vmatpush1.bf16.msra.mxu0 %v804
    %824 = vmatprep.subr.bf16.mxu0 0
    %825 = vmatpush1.bf16.msra.mxu0 %v803
    %826 = vmatprep.subr.bf16.mxu0 0
    %827 = vmatpush2.bf16.msra.mxu0 0
    %828 = vmatprep.subr.bf16.mxu0 0
    %829 = vmatpush2.bf16.msra.mxu0 0
    %830 = vmatprep.subr.bf16.mxu0 0
    %831 = vmatpush2.bf16.msra.mxu0 0
    %832 = vmatprep.subr.bf16.mxu0 0
    %833 = vmatpush2.bf16.msra.mxu0 0
    %834 = vmatprep.subr.bf16.mxu0 0
    %835 = vmatpush2.bf16.msra.mxu0 0
    %836 = vmatprep.subr.bf16.mxu0 0
    %837 = vmatpush2.bf16.msra.mxu0 0
    %838 = vmatprep.subr.bf16.mxu0 0
    %839 = vmatpush2.bf16.msra.mxu0 0
    %840 = vmatprep.subr.bf16.mxu0 0
    %841 = vmatpush2.bf16.msra.mxu0 0
    %842 = vmatprep.mubr.bf16.mxu0 0
    %843 = vmatmul.mubr.bf16.gmra.mxu0 %v808
    %v844 = vpop.f32.mrf.mxu0
    %v845 = vadd.f32 %v793, %v844
    %v846 = vpop.f32.mrf.mxu0
    %v847 = vpop.f32.mrf.mxu0
    %v848 = vpop.f32.mrf.mxu0
    %849 = vdwg.mxu0
    %v850 = vlaneseq
    %v851 = vand.u32 %v850, 127
    %vm852 = vcmp.eq.s32.totalorder %v851, 0
    %v853 = vxor.u32 %v845, 2147483648
    %v854 = vmul.f32 %v853, 1.442695
    %v855 = vpow.pop %v854
    %v856 = vadd.f32 %v855, 1.0
    %v857 = vrcp.pop %v856
    %v858 = vmul.f32 1.0, %v857
    %v859 = vsel %vm852, %v858, %v845
    %v860 = vmax.f32 %v859, 1e-15
    %v861 = vmin.f32 %v860, 1.0
    %vm862 = vcmask 15360
    %863 = vst.msk [vmem:[%s9] sm:$0xff] %vm862, %v861
    // Predicated region
    $region46: #{dcn4mmoe_forward.1} parent=1 // pred_check
      _
    $region47: #{dcn4mmoe_forward.1} parent=1 // pred_check_branch
      %865 = sbr.rel (0) target = $region49
    $region48: #{dcn4mmoe_forward.1} parent=1 // pred_region
      _
    $region49: #{dcn4mmoe_forward.1} parent=1 // pred_fallthru
      _
    // Predicated region
    $region50: #{dcn4mmoe_forward.1} parent=1 // pred_check
      _
    $region51: #{dcn4mmoe_forward.1} parent=1 // pred_check_branch
      %867 = sbr.rel (0) target = $region53
    $region52: #{dcn4mmoe_forward.1} parent=1 // pred_region
      _
    $region53: #{dcn4mmoe_forward.1} parent=1 // pred_fallthru
      _
    %868 = vsyncpa [#allocation3], 1
    %869 = vsyncpa [#allocation5], 1

</llo_original>
